<compile_context>
chip_gen: v6e
topology: v6e:2x2x1
jax: 0.10.0
libtpu: 0.0.40
codegen_flags: <defaults>
</compile_context>

<pallas_src>
import jax
import jax.numpy as jnp
from jax.experimental import pallas as pl
from jax.experimental.pallas import tpu as pltpu


# ---------------------------------------------------------------------------
# Kernel
# ---------------------------------------------------------------------------
def pe_add_kernel(x_ref, pe_ref, o_ref):
    # x_ref: (bb, tt, L), pe_ref: (tt, L), o_ref: (bb, tt, L)
    # pe is already in x.dtype -> single vector add per vreg, broadcast over batch.
    o_ref[...] = x_ref[...] + pe_ref[...][None, :, :]


# ---------------------------------------------------------------------------
# PE table construction (same as the PyTorch registered buffer)
# ---------------------------------------------------------------------------
def make_sinusoidal_pe(block_size, n_embd, dtype=jnp.float32):
    assert n_embd % 2 == 0, "n_embd must be even for sin/cos interleave"
    position = jnp.arange(block_size, dtype=jnp.float32)[:, None]          # (T, 1)
    div_term = jnp.exp(
        jnp.arange(0, n_embd, 2, dtype=jnp.float32)
        * (-jnp.log(10000.0) / n_embd)
    )                                                                      # (C//2,)
    angles = position * div_term                                           # (T, C//2)
    pe = jnp.zeros((block_size, n_embd), dtype=jnp.float32)
    pe = pe.at[:, 0::2].set(jnp.sin(angles))
    pe = pe.at[:, 1::2].set(jnp.cos(angles))
    return pe.astype(dtype)


# ---------------------------------------------------------------------------
# Tiling helpers
# ---------------------------------------------------------------------------
def _vmem_limit_bytes():
    """Scoped-VMEM limit derived from the chip's physical VMEM capacity."""
    cap = 64 * 1024 * 1024  # conservative default (v7x per-TC VMEM)
    try:
        info = pltpu.get_tpu_info()
        cap = int(getattr(info, "vmem_capacity_bytes", cap))
    except Exception:
        pass
    # Use ~3/4 of physical, capped at 96 MiB:
    #   v5e/v6e (128 MiB physical) -> 96 MiB;  v7x (64 MiB) -> 48 MiB.
    return min((cap * 3) // 4, 96 * 1024 * 1024)


def _maybe_fold_lanes(x, pe_t):
    """If C < 128, fold rows so the last dim is lane-dense (128 lanes)."""
    B, T, C = x.shape
    if C >= 128:
        return x, pe_t, False
    L = 128
    if (T * C) % L != 0:
        return x, pe_t, False  # leave as-is; C == full last dim is still legal
    R = (T * C) // L
    return x.reshape(B, R, L), pe_t.reshape(R, L), True


def _choose_tiles(B, R, L, x_isz, pe_isz, vmem_limit):
    """Pick (bb, tt): batch tile and row tile (multiple of 8 or == R).

    Pipelined VMEM footprint per grid step (double-buffered x-in, out, pe):
        2 * (2*bb*tt*L*x_isz + tt*L*pe_isz)
    Prefer tt >= 128 rows; split the batch axis rather than shrinking tt.
    """
    budget = int(vmem_limit * 0.8)  # headroom for compiler scratch
    bb = max(1, B)
    while True:
        denom = 2 * (2 * bb * L * x_isz + L * pe_isz)
        tt_max = budget // max(denom, 1)
        if tt_max >= R:
            tt = R
        else:
            tt = max(8, (tt_max // 8) * 8)
        if tt >= min(R, 128) or bb == 1:
            break
        bb = max(1, bb // 2)

    tt = min(tt, R)
    if tt < R and tt % 8 != 0:          # safety: keep layout legal
        tt = R

    # Megacore (v7x): if everything fits in one grid step but the input is
    # large, split the row axis so both TensorCores get work.  Costs one
    # extra ~0.35us step on single-TC chips -> negligible at this size.
    nb = -(-B // bb)
    nr = -(-R // tt)
    if nb * nr == 1 and R >= 128:
        tt = max(8, ((R // 2 + 7) // 8) * 8)
    return bb, tt


# ---------------------------------------------------------------------------
# Wrapper
# ---------------------------------------------------------------------------
def positional_encoding(x, pe):
    """x: (B, T, C); pe: (block_size, C), block_size >= T. Returns x + pe[:T]."""
    B, T, C = x.shape
    assert pe.shape[0] >= T and pe.shape[1] == C, "pe table too small for input"

    # Static slice + one-time cast (like indexing the registered buffer).
    # Note: add is done in x.dtype (tiny deviation from torch promote-then-round
    # only when x is bf16/fp16; exact for f32).
    pe_t = pe[:T].astype(x.dtype)

    # Lane-dense fold for narrow embeddings (no-op for C >= 128).
    x2, pe2, folded = _maybe_fold_lanes(x, pe_t)
    Bf, R, L = x2.shape

    x_isz = jnp.dtype(x2.dtype).itemsize
    pe_isz = jnp.dtype(pe2.dtype).itemsize
    vmem_limit = _vmem_limit_bytes()
    bb, tt = _choose_tiles(Bf, R, L, x_isz, pe_isz, vmem_limit)

    grid = (pl.cdiv(Bf, bb), pl.cdiv(R, tt))   # ragged blocks handled by Pallas

    bytes_accessed = 2 * x2.size * x_isz + pe2.size * pe_isz
    cost = pl.CostEstimate(flops=B * T * C, transcendentals=0,
                           bytes_accessed=bytes_accessed)

    out = pl.pallas_call(
        pe_add_kernel,
        out_shape=jax.ShapeDtypeStruct((Bf, R, L), x2.dtype),
        grid_spec=pltpu.PrefetchScalarGridSpec(
            num_scalar_prefetch=0,
            grid=grid,
            in_specs=[
                pl.BlockSpec((bb, tt, L), lambda b, t: (b, t, 0)),   # x slab
                pl.BlockSpec((tt, L), lambda b, t: (t, 0)),          # pe slab
            ],
            out_specs=pl.BlockSpec((bb, tt, L), lambda b, t: (b, t, 0)),
        ),
        compiler_params=pltpu.CompilerParams(
            dimension_semantics=("parallel", "parallel"),
            vmem_limit_bytes=vmem_limit,
        ),
        cost_estimate=cost,
    )(x2, pe2)

    if folded:
        out = out.reshape(B, T, C)
    return out


def positional_encoding_ref(x, pe):
    T = x.shape[1]
    return x + pe[None, :T, :].astype(x.dtype)


# ---------------------------------------------------------------------------
# Demo / self-test
# ---------------------------------------------------------------------------
if __name__ == "__main__":
    # Small shapes consistent with the module: batch=2, seq=8, n_embd=32,
    # buffer length block_size=16 (longer than the sequence, as in PyTorch).
    B, T, C = 2, 8, 32
    block_size = 16

    key = jax.random.PRNGKey(0)
    x = jax.random.normal(key, (B, T, C), dtype=jnp.float32)
    pe = make_sinusoidal_pe(block_size, C)

    out = positional_encoding(x, pe)
    out = jax.block_until_ready(out)

    ref = positional_encoding_ref(x, pe)
    assert out.shape == (B, T, C)
    assert jnp.allclose(out, ref, atol=1e-6, rtol=1e-6), "mismatch vs reference"

    print("KERNEL_OK")
</pallas_src>

<mosaic_0001>
module attributes {stable_mosaic.version = 11 : i64} {
  func.func @pe_add_kernel(%arg0: i32, %arg1: i32, %arg2: memref<2x2x128xf32, #tpu.memory_space<vmem>>, %arg3: memref<2x128xf32, #tpu.memory_space<vmem>>, %arg4: memref<2x2x128xf32, #tpu.memory_space<vmem>>) attributes {dimension_semantics = [#tpu.dimension_semantics<parallel>, #tpu.dimension_semantics<parallel>], iteration_bounds = array<i64: 1, 1>, scalar_prefetch = 0 : i64, scratch_operands = 0 : i64, tpu.core_type = #tpu.core_type<tc>, window_params = [{transform_indices = @transform_0, window_bounds = array<i64: 2, 2, 128>}, {transform_indices = @transform_1, window_bounds = array<i64: 2, 128>}, {transform_indices = @transform_2, window_bounds = array<i64: 2, 2, 128>}]} {
    %c0 = arith.constant 0 : index
    %c0_0 = arith.constant 0 : index
    %c0_1 = arith.constant 0 : index
    %0 = vector.load %arg2[%c0, %c0_0, %c0_1] : memref<2x2x128xf32, #tpu.memory_space<vmem>>, vector<2x2x128xf32>
    %c0_2 = arith.constant 0 : index
    %c0_3 = arith.constant 0 : index
    %1 = vector.load %arg3[%c0_2, %c0_3] : memref<2x128xf32, #tpu.memory_space<vmem>>, vector<2x128xf32>
    %2 = vector.shape_cast %1 : vector<2x128xf32> to vector<1x2x128xf32>
    %3 = vector.broadcast %2 : vector<1x2x128xf32> to vector<2x2x128xf32>
    %4 = arith.addf %0, %3 : vector<2x2x128xf32>
    %c0_4 = arith.constant 0 : index
    %c0_5 = arith.constant 0 : index
    %c0_6 = arith.constant 0 : index
    %5 = vector.load %arg4[%c0_4, %c0_5, %c0_6] : memref<2x2x128xf32, #tpu.memory_space<vmem>>, vector<2x2x128xf32>
    tpu.vector_store %arg4[%c0_4, %c0_5, %c0_6], %4 {strides = array<i32>} : memref<2x2x128xf32, #tpu.memory_space<vmem>>, vector<2x2x128xf32>,
    return
  }
  func.func @transform_0(%arg0: i32, %arg1: i32) -> (i32, i32, i32) {
    %c0_i32 = arith.constant 0 : i32
    %c0_i32_0 = arith.constant 0 : i32
    return %arg0, %arg1, %c0_i32 : i32, i32, i32
  }
  func.func @transform_1(%arg0: i32, %arg1: i32) -> (i32, i32) {
    %c0_i32 = arith.constant 0 : i32
    %c0_i32_0 = arith.constant 0 : i32
    return %arg1, %c0_i32 : i32, i32
  }
  func.func @transform_2(%arg0: i32, %arg1: i32) -> (i32, i32, i32) {
    %c0_i32 = arith.constant 0 : i32
    %c0_i32_0 = arith.constant 0 : i32
    return %arg0, %arg1, %c0_i32 : i32, i32, i32
  }
}

</mosaic_0001>

<llo_original>
// kernel: tpu_custom_call.1
$region0: #{tpu_custom_call.1}
  #allocation0 [shape = 'u32[]', space=smem, size = 0x4, offset = 0x4, fixed_abs, tag = 'smem constant byte address 0x4 - core index']
  #allocation1 [shape = 'u32[144,128]{1,0:T(1,128)}', space=vmem, size = 0x12000, scoped, tag = 'internal scratch']
  %s0 = inlined_call_operand.hbm [shape: f32[2,2,128], index: 0, kind: input, shape index: {}]
  %s1 = inlined_call_operand.hbm [shape: f32[2,128], index: 1, kind: input, shape index: {}]
  %s2 = inlined_call_operand.hbm [shape: f32[2,2,128], index: 2, kind: output, shape index: {}]
  %s3 = sld [smem:[#allocation0]]
  $region26: #{tpu_custom_call.1} parent=0
    _
  %s5 = ssub.s32 1, %s3
  %s6 = scalar_select 0, %s5, %s3
  $region1: #{tpu_custom_call.1} parent=0
    #allocation2 [shape = 'u8[2048]{0}', space=vmem, size = 0x800, scoped, tag = 'input window, operand 0, single buffered']
    #allocation3 [shape = 's32[1]{0}', space=sflag, size = 0x4, scoped, tag = 'scoped memory for tpu_custom_call.1']
    #allocation4 [shape = 's32[1]{0}', space=sflag, size = 0x4, scoped, tag = 'scoped memory for tpu_custom_call.1']
    #allocation5 [shape = 'u8[1024]{0}', space=vmem, size = 0x400, scoped, tag = 'input window, operand 1, single buffered']
    #allocation6 [shape = 's32[1]{0}', space=sflag, size = 0x4, scoped, tag = 'scoped memory for tpu_custom_call.1']
    #allocation7 [shape = 'u8[2048]{0}', space=vmem, size = 0x800, scoped, tag = 'output window, operand 0, single buffered']
    %7 = vsyncpa [#allocation3], 0
    %8 = vsyncpa [#allocation6], 0
    %9 = vsyncpa [#allocation4], 0
    // Predicated region
    $region2: #{tpu_custom_call.1} parent=1 // pred_check
      _
    $region3: #{tpu_custom_call.1} parent=1 // pred_check_branch
      %11 = sbr.rel (0) target = $region5
    $region4: #{tpu_custom_call.1} parent=1 // pred_region
      %s13 = ssub.s32 64, 64
      %14 = vsyncadd [#allocation3], %s13
      %s15 = sshll.u32 [#allocation2], 4
      %s16 = int_to_ptr.vmem [resolvable:$true] %s15
      %21 = dma.hbm_to_vmem [thread:$0]  %s0, 64, %s16, [#allocation3], 32, 32, 2
    $region5: #{tpu_custom_call.1} parent=1 // pred_fallthru
      _
    // Predicated region
    $region6: #{tpu_custom_call.1} parent=1 // pred_check
      _
    $region7: #{tpu_custom_call.1} parent=1 // pred_check_branch
      %23 = sbr.rel (0) target = $region9
    $region8: #{tpu_custom_call.1} parent=1 // pred_region
      %s25 = ssub.s32 32, 32
      %26 = vsyncadd [#allocation6], %s25
      %s28 = sshll.u32 [#allocation5], 4
      %s29 = int_to_ptr.vmem [resolvable:$true] %s28
      %31 = dma.hbm_to_vmem [thread:$0]  %s1, 32, %s29, [#allocation6]
    $region9: #{tpu_custom_call.1} parent=1 // pred_fallthru
      _
    // Predicated region
    $region10: #{tpu_custom_call.1} parent=1 // pred_check
      _
    $region11: #{tpu_custom_call.1} parent=1 // pred_check_branch
      %33 = sbr.rel (0) target = $region13
    $region12: #{tpu_custom_call.1} parent=1 // pred_region
      %34 = dma.done [#allocation3], 64
    $region13: #{tpu_custom_call.1} parent=1 // pred_fallthru
      _
    // Predicated region
    $region14: #{tpu_custom_call.1} parent=1 // pred_check
      _
    $region15: #{tpu_custom_call.1} parent=1 // pred_check_branch
      %36 = sbr.rel (0) target = $region17
    $region16: #{tpu_custom_call.1} parent=1 // pred_region
      %37 = dma.done [#allocation6], 32
    $region17: #{tpu_custom_call.1} parent=1 // pred_fallthru
      _
    %v38 = vld [vmem:[#allocation2] sm:$0x3]
    %v39 = vld [vmem:[#allocation2 + $0x2] sm:$0x3]
    %v40 = vld [vmem:[#allocation5] sm:$0x3]
    %v41 = vadd.f32 %v38, %v40
    %v42 = vadd.f32 %v39, %v40
    %43 = vst [vmem:[#allocation7] sm:$0x3] %v41
    %44 = vst [vmem:[#allocation7 + $0x2] sm:$0x3] %v42
    // Predicated region
    $region18: #{tpu_custom_call.1} parent=1 // pred_check
      _
    $region19: #{tpu_custom_call.1} parent=1 // pred_check_branch
      %46 = sbr.rel (0) target = $region21
    $region20: #{tpu_custom_call.1} parent=1 // pred_region
      %s48 = ssub.s32 64, 64
      %49 = vsyncadd [#allocation4], %s48
      %s50 = sshll.u32 [#allocation7], 4
      %s51 = int_to_ptr.vmem [resolvable:$true] %s50
      %56 = dma.vmem_to_hbm [thread:$0]  %s51, 64, %s2, [#allocation4], 32, 32, 2
    $region21: #{tpu_custom_call.1} parent=1 // pred_fallthru
      _
    // Predicated region
    $region22: #{tpu_custom_call.1} parent=1 // pred_check
      _
    $region23: #{tpu_custom_call.1} parent=1 // pred_check_branch
      %58 = sbr.rel (0) target = $region25
    $region24: #{tpu_custom_call.1} parent=1 // pred_region
      %59 = dma.done [#allocation4], 64
    $region25: #{tpu_custom_call.1} parent=1 // pred_fallthru
      _
    %60 = vsyncpa [#allocation3], 1
    %61 = vsyncpa [#allocation6], 1
    %62 = vsyncpa [#allocation4], 1

</llo_original>
